<compile_context>
chip_gen: v5e
topology: v5e:2x2
jax: 0.10.0
libtpu: 0.0.40
codegen_flags: <defaults>
</compile_context>

<pallas_src>
import jax
import jax.numpy as jnp
from jax import lax
from jax.experimental import pallas as pl
from jax.experimental.pallas import tpu as pltpu


def _gated_fusion_kernel(a_ref, w_ref, o_ref):
    # a_ref : (tm, H)  activation tile in VMEM
    # w_ref : (H, H)   nn.Linear weight in PyTorch layout (resident block)
    # o_ref : (tm, H)  output tile
    a = a_ref[...]
    # logits = a @ W.T  -> contract a's feature axis with the weight's last
    # axis directly on the MXU (no transpose materialized), f32 accumulation.
    logits = lax.dot_general(
        a, w_ref[...],
        dimension_numbers=(((1,), (1,)), ((), ())),
        preferred_element_type=jnp.float32)
    # Sigmoid gate on the EUP; gating multiply in the activation dtype.
    z = jax.nn.sigmoid(logits).astype(o_ref.dtype)
    o_ref[...] = z * a.astype(o_ref.dtype)


def _round_up(x, m):
    return ((x + m - 1) // m) * m


def unimodal_gated_fusion(a, weight, *, block_m=None):
    """sigmoid(a @ weight.T) * a, same shape/dtype as `a`.

    a      : (..., H) activations
    weight : (H, H)   nn.Linear weight in PyTorch layout (out_features, in_features)
    """
    hidden = a.shape[-1]
    assert weight.shape == (hidden, hidden), "weight must be (hidden, hidden)"

    orig_shape = a.shape
    a2d = a.reshape(-1, hidden)  # (M, H)
    m = a2d.shape[0]
    dtype_bytes = jnp.dtype(a.dtype).itemsize

    # ---- choose the row-tile size ------------------------------------------
    if block_m is None:
        block_m = 1024 if dtype_bytes <= 2 else 512
    block_m = max(8, _round_up(block_m, 8))

    # VMEM accounting (bytes): a-tile + out-tile double-buffered, plus the
    # resident weight (count it twice to stay safe w.r.t. buffer allocation).
    vmem_budget_bytes = 26 * 1024 * 1024

    def _vmem_bytes(tm):
        return (2 * 2 * tm * hidden + 2 * hidden * hidden) * dtype_bytes

    while block_m > 8 and _vmem_bytes(block_m) > vmem_budget_bytes:
        block_m //= 2
    # TODO(synk): for very large H (H*H*bytes alone near the VMEM budget) the
    # weight should be split along its input axis with an f32 accumulator
    # scratch instead of being kept fully resident.

    # Never use a tile larger than M rounded up to the sublane multiple.
    block_m = min(block_m, _round_up(m, 8))

    # Partial final tile along M is handled by Pallas (reads padded, writes
    # masked); each row's result is independent, so no host-side pad needed.
    grid_m = pl.cdiv(m, block_m)

    cost = pl.CostEstimate(
        flops=2 * m * hidden * hidden,
        transcendentals=m * hidden,
        bytes_accessed=(2 * m * hidden + hidden * hidden) * dtype_bytes,
    )

    out = pl.pallas_call(
        _gated_fusion_kernel,
        out_shape=jax.ShapeDtypeStruct((m, hidden), a.dtype),
        grid_spec=pltpu.PrefetchScalarGridSpec(
            num_scalar_prefetch=0,
            grid=(grid_m,),
            in_specs=[
                # Activations: one row tile per grid step (pipelined).
                pl.BlockSpec((block_m, hidden), lambda i: (i, 0)),
                # Weight: full array, same block every step -> stays resident.
                pl.BlockSpec((hidden, hidden), lambda i: (0, 0)),
            ],
            out_specs=pl.BlockSpec((block_m, hidden), lambda i: (i, 0)),
        ),
        compiler_params=pltpu.CompilerParams(
            dimension_semantics=("parallel",),
            vmem_limit_bytes=32 * 1024 * 1024,
        ),
        cost_estimate=cost,
    )(a2d, weight)

    return out.reshape(orig_shape)


def _reference(a, weight):
    # Pure-JAX reference of the PyTorch forward.
    z = jax.nn.sigmoid(jnp.einsum("...h,oh->...o", a, weight))
    return z * a


if __name__ == "__main__":
    key = jax.random.PRNGKey(0)
    k_a, k_w, k_a2 = jax.random.split(key, 3)

    # Small shapes consistent with the module: (batch, seq, hidden).
    batch, seq, hidden = 2, 8, 32
    a = jax.random.normal(k_a, (batch, seq, hidden), dtype=jnp.float32)
    # Deterministic synthetic weight (mimics nn.Linear's uniform init range).
    bound = 1.0 / jnp.sqrt(hidden)
    weight = jax.random.uniform(
        k_w, (hidden, hidden), dtype=jnp.float32, minval=-bound, maxval=bound)

    out = unimodal_gated_fusion(a, weight)
    out = jax.block_until_ready(out)
    ref = _reference(a, weight)
    assert out.shape == a.shape and out.dtype == a.dtype
    assert jnp.allclose(out, ref, atol=1e-5, rtol=1e-5), "mismatch vs reference"

    # Second check: multi-tile grid with a partial final tile (M=20, tm=8 ->
    # grid=3, last tile half-valid) to exercise the pipelined/masked path.
    a2 = jax.random.normal(k_a2, (1, 20, hidden), dtype=jnp.float32)
    out2 = jax.block_until_ready(unimodal_gated_fusion(a2, weight, block_m=8))
    ref2 = _reference(a2, weight)
    assert out2.shape == a2.shape
    assert jnp.allclose(out2, ref2, atol=1e-5, rtol=1e-5), "tiled-path mismatch"

    print("KERNEL_OK")
</pallas_src>

<mosaic_0001>
module attributes {stable_mosaic.version = 11 : i64} {
  func.func @_gated_fusion_kernel(%arg0: i32, %arg1: memref<16x32xf32, #tpu.memory_space<vmem>>, %arg2: memref<32x32xf32, #tpu.memory_space<vmem>>, %arg3: memref<16x32xf32, #tpu.memory_space<vmem>>) attributes {dimension_semantics = [#tpu.dimension_semantics<parallel>], iteration_bounds = array<i64: 1>, scalar_prefetch = 0 : i64, scratch_operands = 0 : i64, tpu.core_type = #tpu.core_type<tc>, window_params = [{transform_indices = @transform_0, window_bounds = array<i64: 16, 32>}, {pipeline_mode = #tpu.pipeline_mode<synchronous>, transform_indices = @transform_1, window_bounds = array<i64: 32, 32>}, {transform_indices = @transform_2, window_bounds = array<i64: 16, 32>}]} {
    %c0 = arith.constant 0 : index
    %c0_0 = arith.constant 0 : index
    %0 = vector.load %arg1[%c0, %c0_0] : memref<16x32xf32, #tpu.memory_space<vmem>>, vector<16x32xf32>
    %c0_1 = arith.constant 0 : index
    %c0_2 = arith.constant 0 : index
    %1 = vector.load %arg2[%c0_1, %c0_2] : memref<32x32xf32, #tpu.memory_space<vmem>>, vector<32x32xf32>
    %cst = arith.constant dense<0.000000e+00> : vector<16x32xf32>
    %2 = tpu.matmul %0, %1, %cst {dimension_numbers = #tpu.dot_dimension_numbers<[1], [1], [0], [0], [0, 0, 1, 0], [], []>} : vector<16x32xf32>, vector<32x32xf32>, vector<16x32xf32> -> vector<16x32xf32>
    %3 = arith.negf %2 : vector<16x32xf32>
    %4 = math.exp %3 : vector<16x32xf32>
    %cst_3 = arith.constant 1.000000e+00 : f32
    %5 = vector.broadcast %cst_3 : f32 to vector<16x32xf32>
    %6 = arith.addf %5, %4 : vector<16x32xf32>
    %7 = arith.divf %5, %6 : vector<16x32xf32>
    %8 = arith.mulf %7, %0 : vector<16x32xf32>
    %c0_4 = arith.constant 0 : index
    %c0_5 = arith.constant 0 : index
    %9 = vector.load %arg3[%c0_4, %c0_5] : memref<16x32xf32, #tpu.memory_space<vmem>>, vector<16x32xf32>
    tpu.vector_store %arg3[%c0_4, %c0_5], %8 {strides = array<i32>} : memref<16x32xf32, #tpu.memory_space<vmem>>, vector<16x32xf32>,
    return
  }
  func.func @transform_0(%arg0: i32) -> (i32, i32) {
    %c0_i32 = arith.constant 0 : i32
    %c0_i32_0 = arith.constant 0 : i32
    return %arg0, %c0_i32 : i32, i32
  }
  func.func @transform_1(%arg0: i32) -> (i32, i32) {
    %c0_i32 = arith.constant 0 : i32
    %c0_i32_0 = arith.constant 0 : i32
    %c0_i32_1 = arith.constant 0 : i32
    return %c0_i32, %c0_i32_0 : i32, i32
  }
  func.func @transform_2(%arg0: i32) -> (i32, i32) {
    %c0_i32 = arith.constant 0 : i32
    %c0_i32_0 = arith.constant 0 : i32
    return %arg0, %c0_i32 : i32, i32
  }
}

</mosaic_0001>

<llo_original>
// kernel: tpu_custom_call.1
$region0: #{tpu_custom_call.1}
  #allocation0 [shape = 'u32[]', space=smem, size = 0x4, offset = 0x4, fixed_abs, tag = 'smem constant byte address 0x4 - core index']
  #allocation1 [shape = 'u32[72,128]{1,0:T(1,128)}', space=vmem, size = 0x9000, scoped, tag = 'internal scratch']
  %s0 = inlined_call_operand.hbm [shape: f32[16,32], index: 0, kind: input, shape index: {}]
  %s1 = inlined_call_operand.hbm [shape: f32[32,32], index: 1, kind: input, shape index: {}]
  %s2 = inlined_call_operand.hbm [shape: f32[16,32], index: 2, kind: output, shape index: {}]
  %s3 = sld [smem:[#allocation0]]
  $region26: #{tpu_custom_call.1} parent=0
    _
  %s5 = ssub.s32 1, %s3
  %s6 = scalar_select 0, %s5, %s3
  $region1: #{tpu_custom_call.1} parent=0
    #allocation2 [shape = 'u8[8192]{0}', space=vmem, size = 0x2000, scoped, tag = 'input window, operand 0, single buffered']
    #allocation3 [shape = 's32[1]{0}', space=sflag, size = 0x4, scoped, tag = 'scoped memory for tpu_custom_call.1']
    #allocation4 [shape = 's32[1]{0}', space=sflag, size = 0x4, scoped, tag = 'scoped memory for tpu_custom_call.1']
    #allocation5 [shape = 'u8[16384]{0}', space=vmem, size = 0x4000, scoped, tag = 'input window, operand 1, single buffered']
    #allocation6 [shape = 's32[1]{0}', space=sflag, size = 0x4, scoped, tag = 'scoped memory for tpu_custom_call.1']
    #allocation7 [shape = 'u8[8192]{0}', space=vmem, size = 0x2000, scoped, tag = 'output window, operand 0, single buffered']
    %7 = vsyncpa [#allocation3], 0
    %8 = vsyncpa [#allocation6], 0
    %9 = vsyncpa [#allocation4], 0
    // Predicated region
    $region2: #{tpu_custom_call.1} parent=1 // pred_check
      _
    $region3: #{tpu_custom_call.1} parent=1 // pred_check_branch
      %11 = sbr.rel (0) target = $region5
    $region4: #{tpu_custom_call.1} parent=1 // pred_region
      %13 = vsyncadd [#allocation3], 0
      %s14 = sshll.u32 %s0, 4
      %s15 = int_to_ptr.hbm [resolvable:$true] %s14
      %s16 = sshll.u32 [#allocation2], 4
      %s17 = int_to_ptr.vmem [resolvable:$true] %s16
      %22 = dma.hbm_to_vmem [thread:$0]  %s15, 256, %s17, [#allocation3], 128, 128, 8
    $region5: #{tpu_custom_call.1} parent=1 // pred_fallthru
      _
    // Predicated region
    $region6: #{tpu_custom_call.1} parent=1 // pred_check
      _
    $region7: #{tpu_custom_call.1} parent=1 // pred_check_branch
      %24 = sbr.rel (0) target = $region9
    $region8: #{tpu_custom_call.1} parent=1 // pred_region
      %26 = vsyncadd [#allocation6], 0
      %s27 = sshll.u32 %s1, 4
      %s28 = int_to_ptr.hbm [resolvable:$true] %s27
      %s29 = sshll.u32 [#allocation5], 4
      %s30 = int_to_ptr.vmem [resolvable:$true] %s29
      %35 = dma.hbm_to_vmem [thread:$0]  %s28, 512, %s30, [#allocation6], 128, 128, 8
    $region9: #{tpu_custom_call.1} parent=1 // pred_fallthru
      _
    // Predicated region
    $region10: #{tpu_custom_call.1} parent=1 // pred_check
      _
    $region11: #{tpu_custom_call.1} parent=1 // pred_check_branch
      %37 = sbr.rel (0) target = $region13
    $region12: #{tpu_custom_call.1} parent=1 // pred_region
      %39 = dma.done [#allocation3], 256
    $region13: #{tpu_custom_call.1} parent=1 // pred_fallthru
      _
    // Predicated region
    $region14: #{tpu_custom_call.1} parent=1 // pred_check
      _
    $region15: #{tpu_custom_call.1} parent=1 // pred_check_branch
      %41 = sbr.rel (0) target = $region17
    $region16: #{tpu_custom_call.1} parent=1 // pred_region
      %43 = dma.done [#allocation6], 512
    $region17: #{tpu_custom_call.1} parent=1 // pred_fallthru
      _
    %v44 = vld [vmem:[#allocation2] sm:$0xff]
    %v45 = vld [vmem:[#allocation2 + $0x8] sm:$0xff]
    %v46 = vld [vmem:[#allocation5] sm:$0xff]
    %v47 = vld [vmem:[#allocation5 + $0x8] sm:$0xff]
    %v48 = vld [vmem:[#allocation5 + $0x10] sm:$0xff]
    %v49 = vld [vmem:[#allocation5 + $0x18] sm:$0xff]
    %vm50 = vcmask 261120
    %v52 = vsel %vm50, %v44, 0
    %v55 = vsel %vm50, %v45, 0
    %v58 = vsel %vm50, %v46, 0
    %v61 = vsel %vm50, %v47, 0
    %v64 = vsel %vm50, %v48, 0
    %v67 = vsel %vm50, %v49, 0
    %69 = vmatpush.xpose.msra.mxu0 0.0
    %70 = vmatpush.xpose.msra.mxu0 0.0
    %71 = vmatpush.xpose.msra.mxu0 0.0
    %72 = vmatpush.xpose.msra.mxu0 0.0
    %73 = vmatpush.xpose.msra.mxu0 0.0
    %74 = vmatpush.xpose.msra.mxu0 0.0
    %75 = vmatpush.xpose.msra.mxu0 0.0
    %76 = vmatpush.xpose.msra.mxu0 0.0
    %77 = vmatpush.xpose.msra.mxu0 0.0
    %78 = vmatpush.xpose.msra.mxu0 0.0
    %79 = vmatpush.xpose.msra.mxu0 0.0
    %80 = vmatpush.xpose.msra.mxu0 0.0
    %81 = vmatpush.xpose.msra.mxu0 %v67
    %82 = vmatpush.xpose.msra.mxu0 %v64
    %83 = vmatpush.xpose.msra.mxu0 %v61
    %84 = vmatpush.xpose.msra.mxu0 %v58
    %85 = vmatmul.f32.gmra.mxu0 %v52
    %v86 = vpop.f32.mrf.mxu0
    %v87 = vadd.f32 0.0, %v86
    %88 = vmatmul.f32.gmra.mxu0 %v55
    %v89 = vpop.f32.mrf.mxu0
    %v90 = vadd.f32 0.0, %v89
    %91 = vdwg.mxu0
    %v92 = vxor.u32 %v87, 2147483648
    %v93 = vxor.u32 %v90, 2147483648
    %v94 = vmul.f32 %v92, 1.442695
    %v95 = vpow.pop %v94
    %v96 = vmul.f32 %v93, 1.442695
    %v97 = vpow.pop %v96
    %v98 = vadd.f32 %v95, 1.0
    %v99 = vadd.f32 %v97, 1.0
    %v100 = vrcp.pop %v98
    %v101 = vmul.f32 %v98, %v100
    %v102 = vsub.f32 1.0, %v101
    %v103 = vmul.f32 %v100, %v102
    %v104 = vadd.f32 %v100, %v103
    %vm105 = vweird.f32 %v98
    %vm106 = vweird.f32 %v100
    %vm107 = vmor %vm105, %vm106
    %v108 = vsel %vm107, %v100, %v104
    %v109 = vand.u32 2147483647, %v98
    %vm110 = vcmp.eq.f32.partialorder %v109, 8.507059e+37
    %v111 = vand.u32 %v98, 2147483648
    %v112 = vor.u32 1.1754944e-38, %v111
    %v113 = vsel %vm110, %v112, %v108
    %v114 = vmul.f32 1.0, %v113
    %v115 = vrcp.pop %v99
    %v116 = vmul.f32 %v99, %v115
    %v117 = vsub.f32 1.0, %v116
    %v118 = vmul.f32 %v115, %v117
    %v119 = vadd.f32 %v115, %v118
    %vm120 = vweird.f32 %v99
    %vm121 = vweird.f32 %v115
    %vm122 = vmor %vm120, %vm121
    %v123 = vsel %vm122, %v115, %v119
    %v124 = vand.u32 2147483647, %v99
    %vm125 = vcmp.eq.f32.partialorder %v124, 8.507059e+37
    %v126 = vand.u32 %v99, 2147483648
    %v127 = vor.u32 1.1754944e-38, %v126
    %v128 = vsel %vm125, %v127, %v123
    %v129 = vmul.f32 1.0, %v128
    %v130 = vmul.f32 %v114, %v44
    %v131 = vmul.f32 %v129, %v45
    %132 = vst.msk [vmem:[#allocation7] sm:$0xff] %vm50, %v130
    %133 = vst.msk [vmem:[#allocation7 + $0x8] sm:$0xff] %vm50, %v131
    // Predicated region
    $region18: #{tpu_custom_call.1} parent=1 // pred_check
      _
    $region19: #{tpu_custom_call.1} parent=1 // pred_check_branch
      %135 = sbr.rel (0) target = $region21
    $region20: #{tpu_custom_call.1} parent=1 // pred_region
      %137 = vsyncadd [#allocation4], 0
      %s138 = sshll.u32 [#allocation7], 4
      %s139 = int_to_ptr.vmem [resolvable:$true] %s138
      %s140 = sshll.u32 %s2, 4
      %s141 = int_to_ptr.hbm [resolvable:$true] %s140
      %146 = dma.vmem_to_hbm [thread:$0]  %s139, 256, %s141, [#allocation4], 128, 128, 8
    $region21: #{tpu_custom_call.1} parent=1 // pred_fallthru
      _
    // Predicated region
    $region22: #{tpu_custom_call.1} parent=1 // pred_check
      _
    $region23: #{tpu_custom_call.1} parent=1 // pred_check_branch
      %148 = sbr.rel (0) target = $region25
    $region24: #{tpu_custom_call.1} parent=1 // pred_region
      %150 = dma.done [#allocation4], 256
    $region25: #{tpu_custom_call.1} parent=1 // pred_fallthru
      _
    %151 = vsyncpa [#allocation3], 1
    %152 = vsyncpa [#allocation6], 1
    %153 = vsyncpa [#allocation4], 1

</llo_original>
